<compile_context>
chip_gen: v7x
topology: tpu7x:2x2x1
jax: 0.10.0
libtpu: 0.0.40
codegen_flags: <defaults>
</compile_context>

<pallas_src>
import functools
import math

import jax
import jax.numpy as jnp
from jax import lax
from jax.experimental import pallas as pl
from jax.experimental.pallas import tpu as pltpu


# ----------------------------------------------------------------------------
# Fused kernel: streamed avg/max pooling + fc1 -> relu -> fc2 -> sigmoid
# ----------------------------------------------------------------------------
def _ca_kernel(x_ref, w1_ref, w2_ref, o_ref, sum_acc, max_acc, *,
               inv_hw, hw, ts, lane_fold, has_tail):
    s = pl.program_id(1)
    C = sum_acc.shape[0]

    if lane_fold:
        # ---- VPU-only fold over 128-lane groups: (C, TS) -> (C, 128) ----
        n_groups = ts // 128
        col = lax.broadcasted_iota(jnp.int32, (C, 128), 1)
        tile_base = s * ts

        def load_group(off):
            blk = x_ref[:, pl.ds(off, 128)].astype(jnp.float32)
            if has_tail:
                valid = (tile_base + off + col) < hw
                return (jnp.where(valid, blk, 0.0),
                        jnp.where(valid, blk, -jnp.inf))
            return blk, blk

        ts_sum, ts_max = load_group(0)
        if n_groups > 1:
            if n_groups <= 32:
                # Short fixed trip count: static unroll (pure vld + vadd/vmax).
                for g in range(1, n_groups):
                    bs, bm = load_group(g * 128)
                    ts_sum = ts_sum + bs
                    ts_max = jnp.maximum(ts_max, bm)
            else:
                def body(g, carry):
                    cs, cm = carry
                    off = pl.multiple_of(g * 128, 128)
                    bs, bm = load_group(off)
                    return cs + bs, jnp.maximum(cm, bm)

                ts_sum, ts_max = lax.fori_loop(1, n_groups, body,
                                               (ts_sum, ts_max))
    else:
        # Single small tile (HW <= 128 or non-lane-aligned full extent).
        xb = x_ref[...].astype(jnp.float32)
        if has_tail:  # defensive; wrapper guarantees no tail on this path
            col = lax.broadcasted_iota(jnp.int32, xb.shape, 1)
            valid = (s * ts + col) < hw
            xs = jnp.where(valid, xb, 0.0)
            xm = jnp.where(valid, xb, -jnp.inf)
        else:
            xs = xm = xb
        ts_sum = jnp.sum(xs, axis=1, keepdims=True)
        ts_max = jnp.max(xm, axis=1, keepdims=True)

    @pl.when(s == 0)
    def _():
        sum_acc[...] = ts_sum
        max_acc[...] = ts_max

    @pl.when(s > 0)
    def _():
        sum_acc[...] = sum_acc[...] + ts_sum
        max_acc[...] = jnp.maximum(max_acc[...], ts_max)

    # ---- Epilogue (once per batch element, on the last spatial tile) ----
    @pl.when(s == pl.num_programs(1) - 1)
    def _():
        avg = jnp.sum(sum_acc[...], axis=1, keepdims=True) * inv_hw  # (C, 1)
        mx = jnp.max(max_acc[...], axis=1, keepdims=True)            # (C, 1)
        pooled = jnp.concatenate([avg, mx], axis=1)                  # (C, 2)
        h = jnp.maximum(
            jnp.dot(w1_ref[...], pooled, preferred_element_type=jnp.float32),
            0.0)                                                     # (Ch, 2)
        hsum = h[:, 0:1] + h[:, 1:2]                                 # (Ch, 1)
        out = jnp.dot(w2_ref[...], hsum,
                      preferred_element_type=jnp.float32)            # (C, 1)
        o_ref[...] = jax.nn.sigmoid(out).astype(o_ref.dtype)


def _pick_spatial_tile(hw, c, itemsize, budget_bytes=8 << 20, max_lanes=16384):
    """Largest lane-aligned spatial tile within the byte budget (cdiv grid,
    so it does NOT need to divide HW)."""
    if hw <= 128:
        return hw
    ts = min(hw, max_lanes, max(128, budget_bytes // (c * itemsize)))
    return max(128, (ts // 128) * 128)


@functools.partial(jax.jit, static_argnames=("spatial_tile",))
def channel_attention(x, w1, w2, spatial_tile=None):
    """x: (B, C, H, W) f32/bf16; w1: (C//16, C) fc1 weight; w2: (C, C//16).
    Returns the sigmoid channel-attention map, shape (B, C, 1, 1), f32."""
    B, C, H, W = x.shape
    Ch = w1.shape[0]
    HW = H * W

    TS = spatial_tile if spatial_tile is not None else _pick_spatial_tile(
        HW, C, x.dtype.itemsize)
    TS = min(TS, HW)
    if TS < HW:                       # multi-tile => must be lane aligned
        TS = max(128, (TS // 128) * 128)
    assert TS <= HW

    lane_fold = (TS % 128 == 0)
    has_tail = (HW % TS) != 0
    LW = 128 if lane_fold else 1      # scratch lane width
    n_s = pl.cdiv(HW, TS)

    xr = x.reshape(B, C, HW)          # free reshape, stays NCHW

    # Deeper input buffering only when the streaming loop is long enough.
    total_steps = B * n_s
    nbuf = 3 if total_steps >= 3 else 2
    x_index_map = lambda b, s: (b, 0, s)
    if nbuf > 2:
        x_spec = pl.BlockSpec((None, C, TS), x_index_map,
                              pipeline_mode=pl.Buffered(nbuf))
    else:
        x_spec = pl.BlockSpec((None, C, TS), x_index_map)

    # VMEM budget: nbuf x tile + (double-buffered) weights + scratch + slack.
    need = (nbuf * C * TS * x.dtype.itemsize
            + 4 * Ch * C * w1.dtype.itemsize
            + 2 * C * LW * 4
            + 2 * C * 4
            + (2 << 20))
    vmem_limit = int(min(max(need, 32 << 20), 48 << 20))

    out = pl.pallas_call(
        functools.partial(_ca_kernel, inv_hw=1.0 / float(HW), hw=HW, ts=TS,
                          lane_fold=lane_fold, has_tail=has_tail),
        out_shape=jax.ShapeDtypeStruct((B, C, 1), jnp.float32),
        grid=(B, n_s),
        in_specs=[
            x_spec,                                              # x tile
            pl.BlockSpec((Ch, C), lambda b, s: (0, 0)),          # fc1 weight
            pl.BlockSpec((C, Ch), lambda b, s: (0, 0)),          # fc2 weight
        ],
        out_specs=pl.BlockSpec((None, C, 1), lambda b, s: (b, 0, 0)),
        scratch_shapes=[
            pltpu.VMEM((C, LW), jnp.float32),   # running sum (lane-wide)
            pltpu.VMEM((C, LW), jnp.float32),   # running max (lane-wide)
        ],
        compiler_params=pltpu.CompilerParams(
            dimension_semantics=("parallel", "arbitrary"),
            vmem_limit_bytes=vmem_limit),
    )(xr, w1, w2)

    return out.reshape(B, C, 1, 1)


# ----------------------------------------------------------------------------
# Parameters (matches PyTorch kaiming_normal_(fan_in, relu), no bias)
# ----------------------------------------------------------------------------
def init_channel_attention_params(key, in_planes):
    hidden = in_planes // 16                     # module hard-codes //16
    k1, k2 = jax.random.split(key)
    w1 = jax.random.normal(k1, (hidden, in_planes), jnp.float32) * math.sqrt(2.0 / in_planes)
    w2 = jax.random.normal(k2, (in_planes, hidden), jnp.float32) * math.sqrt(2.0 / hidden)
    return w1, w2


# Pure-JAX reference (mirrors the PyTorch forward exactly)
def channel_attention_ref(x, w1, w2):
    avg = jnp.mean(x, axis=(2, 3))               # (B, C)
    mx = jnp.max(x, axis=(2, 3))                 # (B, C)

    def branch(v):
        return jnp.maximum(v @ w1.T, 0.0) @ w2.T

    out = jax.nn.sigmoid(branch(avg) + branch(mx))
    return out[:, :, None, None]


# ----------------------------------------------------------------------------
if __name__ == "__main__":
    key = jax.random.PRNGKey(0)
    ks = jax.random.split(key, 8)

    def check(out, ref, atol, tag):
        assert out.shape == ref.shape, tag
        assert jnp.allclose(out, ref, rtol=1e-5, atol=atol), f"mismatch: {tag}"

    # 1) Single lane-aligned tile, unrolled lane-group fold (B=2, C=64, 16x16).
    B, C, H, W = 2, 64, 16, 16
    x = jax.random.normal(ks[0], (B, C, H, W), jnp.float32)
    w1, w2 = init_channel_attention_params(ks[1], C)
    out = jax.block_until_ready(channel_attention(x, w1, w2))
    check(out, channel_attention_ref(x, w1, w2), 1e-5, "single-tile")

    # 2) Multi-tile streaming reduction + Buffered(3) input pipeline.
    B2, C2, H2, W2 = 1, 32, 64, 64
    x2 = jax.random.normal(ks[2], (B2, C2, H2, W2), jnp.float32)
    w1b, w2b = init_channel_attention_params(ks[3], C2)
    out2 = jax.block_until_ready(channel_attention(x2, w1b, w2b, spatial_tile=1024))
    check(out2, channel_attention_ref(x2, w1b, w2b), 1e-5, "multi-tile")

    # 3) cdiv grid with a masked tail tile (HW=196, TS=128).
    B3, C3, H3, W3 = 1, 64, 14, 14
    x3 = jax.random.normal(ks[4], (B3, C3, H3, W3), jnp.float32)
    w1c, w2c = init_channel_attention_params(ks[5], C3)
    out3 = jax.block_until_ready(channel_attention(x3, w1c, w2c))
    check(out3, channel_attention_ref(x3, w1c, w2c), 1e-5, "tail-tile")

    # 4) Tiny spatial extent (HW <= 128): single-tile fallback path.
    B4, C4, H4, W4 = 2, 64, 8, 8
    x4 = jax.random.normal(ks[6], (B4, C4, H4, W4), jnp.float32)
    out4 = jax.block_until_ready(channel_attention(x4, w1, w2))
    check(out4, channel_attention_ref(x4, w1, w2), 1e-5, "tiny-spatial")

    # 5) bf16 activations: kernel upcasts each loaded group to f32.
    xb16 = x.astype(jnp.bfloat16)
    out5 = jax.block_until_ready(channel_attention(xb16, w1, w2))
    check(out5, channel_attention_ref(xb16.astype(jnp.float32), w1, w2),
          1e-4, "bf16-input")

    print("KERNEL_OK")
</pallas_src>

<mosaic_0001>
module attributes {stable_mosaic.version = 11 : i64} {
  func.func @_ca_kernel(%arg0: i32, %arg1: i32, %arg2: memref<1x64x256xf32, #tpu.memory_space<vmem>>, %arg3: memref<4x64xf32, #tpu.memory_space<vmem>>, %arg4: memref<64x4xf32, #tpu.memory_space<vmem>>, %arg5: memref<1x64x1xf32, #tpu.memory_space<vmem>>, %arg6: memref<64x128xf32, #tpu.memory_space<vmem>>, %arg7: memref<64x128xf32, #tpu.memory_space<vmem>>) attributes {dimension_semantics = [#tpu.dimension_semantics<parallel>, #tpu.dimension_semantics<arbitrary>], iteration_bounds = array<i64: 2, 1>, scalar_prefetch = 0 : i64, scratch_operands = 2 : i64, tpu.core_type = #tpu.core_type<tc>, window_params = [{transform_indices = @transform_0, window_bounds = array<i64: 1, 64, 256>}, {pipeline_mode = #tpu.pipeline_mode<synchronous>, transform_indices = @transform_1, window_bounds = array<i64: 4, 64>}, {pipeline_mode = #tpu.pipeline_mode<synchronous>, transform_indices = @transform_2, window_bounds = array<i64: 64, 4>}, {transform_indices = @transform_3, window_bounds = array<i64: 1, 64, 1>}]} {
    %c0 = arith.constant 0 : index
    %c0_0 = arith.constant 0 : index
    %c0_1 = arith.constant 0 : index
    %0 = vector.load %arg2[%c0, %c0_0, %c0_1] : memref<1x64x256xf32, #tpu.memory_space<vmem>>, vector<1x64x128xf32>
    %1 = vector.shape_cast %0 : vector<1x64x128xf32> to vector<64x128xf32>
    %c0_2 = arith.constant 0 : index
    %c0_3 = arith.constant 0 : index
    %c128 = arith.constant 128 : index
    %2 = vector.load %arg2[%c0_2, %c0_3, %c128] : memref<1x64x256xf32, #tpu.memory_space<vmem>>, vector<1x64x128xf32>
    %3 = vector.shape_cast %2 : vector<1x64x128xf32> to vector<64x128xf32>
    %4 = arith.addf %1, %3 : vector<64x128xf32>
    %5 = arith.maximumf %1, %3 : vector<64x128xf32>
    %c0_i32 = arith.constant 0 : i32
    %6 = arith.cmpi eq, %arg1, %c0_i32 : i32
    %7 = arith.extui %6 : i1 to i32
    %c0_i32_4 = arith.constant 0 : i32
    %8 = arith.cmpi ne, %7, %c0_i32_4 : i32
    scf.if %8 {
      %c0_9 = arith.constant 0 : index
      %c0_10 = arith.constant 0 : index
      %15 = vector.load %arg6[%c0_9, %c0_10] : memref<64x128xf32, #tpu.memory_space<vmem>>, vector<64x128xf32>
      tpu.vector_store %arg6[%c0_9, %c0_10], %4 {strides = array<i32>} : memref<64x128xf32, #tpu.memory_space<vmem>>, vector<64x128xf32>,
      %c0_11 = arith.constant 0 : index
      %c0_12 = arith.constant 0 : index
      %16 = vector.load %arg7[%c0_11, %c0_12] : memref<64x128xf32, #tpu.memory_space<vmem>>, vector<64x128xf32>
      tpu.vector_store %arg7[%c0_11, %c0_12], %5 {strides = array<i32>} : memref<64x128xf32, #tpu.memory_space<vmem>>, vector<64x128xf32>,
    } else {
    }
    %c0_i32_5 = arith.constant 0 : i32
    %9 = arith.cmpi sgt, %arg1, %c0_i32_5 : i32
    %10 = arith.extui %9 : i1 to i32
    %c0_i32_6 = arith.constant 0 : i32
    %11 = arith.cmpi ne, %10, %c0_i32_6 : i32
    scf.if %11 {
      %c0_9 = arith.constant 0 : index
      %c0_10 = arith.constant 0 : index
      %15 = vector.load %arg6[%c0_9, %c0_10] : memref<64x128xf32, #tpu.memory_space<vmem>>, vector<64x128xf32>
      %16 = arith.addf %15, %4 : vector<64x128xf32>
      %c0_11 = arith.constant 0 : index
      %c0_12 = arith.constant 0 : index
      %17 = vector.load %arg6[%c0_11, %c0_12] : memref<64x128xf32, #tpu.memory_space<vmem>>, vector<64x128xf32>
      tpu.vector_store %arg6[%c0_11, %c0_12], %16 {strides = array<i32>} : memref<64x128xf32, #tpu.memory_space<vmem>>, vector<64x128xf32>,
      %c0_13 = arith.constant 0 : index
      %c0_14 = arith.constant 0 : index
      %18 = vector.load %arg7[%c0_13, %c0_14] : memref<64x128xf32, #tpu.memory_space<vmem>>, vector<64x128xf32>
      %19 = arith.maximumf %18, %5 : vector<64x128xf32>
      %c0_15 = arith.constant 0 : index
      %c0_16 = arith.constant 0 : index
      %20 = vector.load %arg7[%c0_15, %c0_16] : memref<64x128xf32, #tpu.memory_space<vmem>>, vector<64x128xf32>
      tpu.vector_store %arg7[%c0_15, %c0_16], %19 {strides = array<i32>} : memref<64x128xf32, #tpu.memory_space<vmem>>, vector<64x128xf32>,
    } else {
    }
    %c0_i32_7 = arith.constant 0 : i32
    %12 = arith.cmpi eq, %arg1, %c0_i32_7 : i32
    %13 = arith.extui %12 : i1 to i32
    %c0_i32_8 = arith.constant 0 : i32
    %14 = arith.cmpi ne, %13, %c0_i32_8 : i32
    scf.if %14 {
      %c0_9 = arith.constant 0 : index
      %c0_10 = arith.constant 0 : index
      %15 = vector.load %arg6[%c0_9, %c0_10] : memref<64x128xf32, #tpu.memory_space<vmem>>, vector<64x128xf32>
      %cst = arith.constant dense<0.000000e+00> : vector<64xf32>
      %16 = vector.multi_reduction <add>, %15, %cst [1] : vector<64x128xf32> to vector<64xf32>
      %17 = vector.shape_cast %16 : vector<64xf32> to vector<64x1xf32>
      %cst_11 = arith.constant 3.906250e-03 : f32
      %18 = vector.broadcast %cst_11 : f32 to vector<64x1xf32>
      %19 = arith.mulf %17, %18 : vector<64x1xf32>
      %c0_12 = arith.constant 0 : index
      %c0_13 = arith.constant 0 : index
      %20 = vector.load %arg7[%c0_12, %c0_13] : memref<64x128xf32, #tpu.memory_space<vmem>>, vector<64x128xf32>
      %cst_14 = arith.constant dense<0xFF800000> : vector<64xf32>
      %21 = vector.multi_reduction <maximumf>, %20, %cst_14 [1] : vector<64x128xf32> to vector<64xf32>
      %22 = vector.shape_cast %21 : vector<64xf32> to vector<64x1xf32>
      %23 = tpu.concatenate %19, %22 in 1 : vector<64x1xf32>, vector<64x1xf32> -> vector<64x2xf32>
      %c0_15 = arith.constant 0 : index
      %c0_16 = arith.constant 0 : index
      %24 = vector.load %arg3[%c0_15, %c0_16] : memref<4x64xf32, #tpu.memory_space<vmem>>, vector<4x64xf32>
      %cst_17 = arith.constant dense<0.000000e+00> : vector<4x2xf32>
      %25 = tpu.matmul %24, %23, %cst_17 {dimension_numbers = #tpu.dot_dimension_numbers<[1], [0], [0], [1], [0, 0, 1, 1], [], []>} : vector<4x64xf32>, vector<64x2xf32>, vector<4x2xf32> -> vector<4x2xf32>
      %cst_18 = arith.constant 0.000000e+00 : f32
      %26 = vector.broadcast %cst_18 : f32 to vector<4x2xf32>
      %27 = arith.maximumf %25, %26 : vector<4x2xf32>
      %28 = vector.extract_strided_slice %27 {offsets = [0, 0], sizes = [4, 1], strides = [1, 1]} : vector<4x2xf32> to vector<4x1xf32>
      %29 = vector.extract_strided_slice %27 {offsets = [0, 1], sizes = [4, 1], strides = [1, 1]} : vector<4x2xf32> to vector<4x1xf32>
      %30 = arith.addf %28, %29 : vector<4x1xf32>
      %c0_19 = arith.constant 0 : index
      %c0_20 = arith.constant 0 : index
      %31 = vector.load %arg4[%c0_19, %c0_20] : memref<64x4xf32, #tpu.memory_space<vmem>>, vector<64x4xf32>
      %cst_21 = arith.constant dense<0.000000e+00> : vector<64x1xf32>
      %32 = tpu.matmul %31, %30, %cst_21 {dimension_numbers = #tpu.dot_dimension_numbers<[1], [0], [0], [1], [0, 0, 1, 1], [], []>} : vector<64x4xf32>, vector<4x1xf32>, vector<64x1xf32> -> vector<64x1xf32>
      %33 = arith.negf %32 : vector<64x1xf32>
      %34 = math.exp %33 : vector<64x1xf32>
      %cst_22 = arith.constant 1.000000e+00 : f32
      %35 = vector.broadcast %cst_22 : f32 to vector<64x1xf32>
      %36 = arith.addf %35, %34 : vector<64x1xf32>
      %37 = arith.divf %35, %36 : vector<64x1xf32>
      %c0_23 = arith.constant 0 : index
      %c0_24 = arith.constant 0 : index
      %c0_25 = arith.constant 0 : index
      %38 = vector.load %arg5[%c0_23, %c0_24, %c0_25] : memref<1x64x1xf32, #tpu.memory_space<vmem>>, vector<1x64x1xf32>
      %39 = vector.shape_cast %38 : vector<1x64x1xf32> to vector<64x1xf32>
      %40 = vector.shape_cast %37 : vector<64x1xf32> to vector<1x64x1xf32>
      tpu.vector_store %arg5[%c0_23, %c0_24, %c0_25], %40 {strides = array<i32>} : memref<1x64x1xf32, #tpu.memory_space<vmem>>, vector<1x64x1xf32>,
    } else {
    }
    return
  }
  func.func @transform_0(%arg0: i32, %arg1: i32) -> (i32, i32, i32) {
    %c0_i32 = arith.constant 0 : i32
    %c0_i32_0 = arith.constant 0 : i32
    return %arg0, %c0_i32, %arg1 : i32, i32, i32
  }
  func.func @transform_1(%arg0: i32, %arg1: i32) -> (i32, i32) {
    %c0_i32 = arith.constant 0 : i32
    %c0_i32_0 = arith.constant 0 : i32
    %c0_i32_1 = arith.constant 0 : i32
    return %c0_i32, %c0_i32_0 : i32, i32
  }
  func.func @transform_2(%arg0: i32, %arg1: i32) -> (i32, i32) {
    %c0_i32 = arith.constant 0 : i32
    %c0_i32_0 = arith.constant 0 : i32
    %c0_i32_1 = arith.constant 0 : i32
    return %c0_i32, %c0_i32_0 : i32, i32
  }
  func.func @transform_3(%arg0: i32, %arg1: i32) -> (i32, i32, i32) {
    %c0_i32 = arith.constant 0 : i32
    %c0_i32_0 = arith.constant 0 : i32
    %c0_i32_1 = arith.constant 0 : i32
    return %arg0, %c0_i32, %c0_i32_0 : i32, i32, i32
  }
}

</mosaic_0001>

<llo_original>
// kernel: channel_attention.1
$region0: #{channel_attention.1}
  #allocation0 [shape = 'u32[]', space=smem, size = 0x4, offset = 0x4, fixed_abs, tag = 'smem constant byte address 0x4 - core index']
  #allocation1 [shape = 'u32[144,128]{1,0:T(1,128)}', space=vmem, size = 0x12000, scoped, tag = 'internal scratch']
  #allocation2 [shape = 'f32[64,128]{1,0:T(8,128)}', space=vmem, size = 0x8000, scoped, tag = 'scratch operand']
  #allocation3 [shape = 'f32[64,128]{1,0:T(8,128)}', space=vmem, size = 0x8000, scoped, tag = 'scratch operand']
  %s0 = inlined_call_operand.vmem [shape: f32[2,64,256], index: 0, kind: input, shape index: {}]
  %s1 = inlined_call_operand.vmem [shape: f32[4,64], index: 1, kind: input, shape index: {}]
  %s2 = inlined_call_operand.vmem [shape: f32[64,4], index: 2, kind: input, shape index: {}]
  %s3 = inlined_call_operand.vmem [shape: f32[2,64,1], index: 3, kind: output, shape index: {}]
  %s4 = sld [smem:[#allocation0]]
  $region57: #{channel_attention.1} parent=0
    _
  %s6 = ssub.s32 1, %s4
  %s7 = scalar_select 0, %s6, %s4
  loop: start=0, step=1, limit=4
  $region2: #{channel_attention.1} parent=0 // loop_pre_header
    _
  $region3: #{channel_attention.1} parent=0 // loop_header
    %s9 = sphi 0, %s13
    %p10 = scmp.ge.s32.totalorder %s9, 4
    %s16 = sphi 0, %s28
    %s17 = sphi 0, %s24
    %s18 = sphi 0, %s16
    %s19 = sphi 0, %s17
    %s20 = sphi 0, %s18
    %s21 = sphi 0, %s19
    %s33 = sphi 0, %s35
    %s36 = sphi 0, %s33
    %s37 = sphi 0, %s36
    %s53 = sphi 0, %s37
    %s57 = sphi 0, %s57
    %s59 = sphi 0, %s57
    %s60 = sphi 0, %s59
    %s74 = sphi 0, %s60
    %s78 = sphi 0, %s78
    %s80 = sphi 0, %s78
    %s81 = sphi 0, %s80
    %s95 = sphi 0, %s81
    %s101 = sphi 0, %s103
    %s104 = sphi 0, %s101
    %s105 = sphi 0, %s104
    %s121 = sphi 0, %s105
  $region4: #{channel_attention.1} parent=0 // loop_header_branch
    %12 = sbr.rel (%p10) target = $region8
  $region5: #{channel_attention.1} parent=0 // loop_body
    %s14 = ssub.s32 %s9, 1
    %s15 = ssub.s32 %s9, 2
    %s22 = sadd.s32 1, %s17
    %p23 = scmp.ge.s32.totalorder %s22, 1
    %s24 = scalar_select %p23, 0, %s22
    %s25 = sadd.s32 1, %s16
    %s26 = scalar_select %p23, %s25, %s16
    %p27 = scmp.ge.s32.totalorder %s26, 2
    %s28 = scalar_select %p27, 0, %s26
    %s29 = ssub.s32 %s16, %s28
    %s30 = ssub.s32 %s17, %s24
    %s31 = sor.u32 %s29, %s30
    %p32 = scmp.eq.s32.totalorder %s31, 0
    %s34 = sadd.s32 %s33, 1
    %s35 = scalar_select %p32, %s33, %s34
    %p38 = pneg %p32
    %p39 = scmp.eq.s32.totalorder %s9, 1
    %p40 = por %p38, %p39
    %p41 = scmp.ne.s32.totalorder %s33, %s36
    %p42 = scmp.eq.s32.totalorder %s9, 0
    %p43 = por %p41, %p42
    %p44 = scmp.ne.s32.totalorder %s33, %s36
    %p45 = scmp.eq.s32.totalorder %s14, 1
    %p46 = por %p44, %p45
    %p47 = scmp.ne.s32.totalorder %s36, %s37
    %p48 = scmp.eq.s32.totalorder %s14, 0
    %p49 = por %p47, %p48
    %p50 = scmp.ne.s32.totalorder %s36, %s37
    %p51 = scmp.eq.s32.totalorder %s15, 1
    %p52 = por %p50, %p51
    %p54 = scmp.ne.s32.totalorder %s37, %s53
    %p55 = scmp.eq.s32.totalorder %s15, 0
    %p56 = por %p54, %p55
    %s58 = sadd.s32 %s57, 1
    %p61 = scmp.eq.s32.totalorder %s9, 1
    %p62 = scmp.ne.s32.totalorder %s57, %s59
    %p63 = scmp.eq.s32.totalorder %s9, 0
    %p64 = por %p62, %p63
    %p65 = scmp.ne.s32.totalorder %s57, %s59
    %p66 = scmp.eq.s32.totalorder %s14, 1
    %p67 = por %p65, %p66
    %p68 = scmp.ne.s32.totalorder %s59, %s60
    %p69 = scmp.eq.s32.totalorder %s14, 0
    %p70 = por %p68, %p69
    %p71 = scmp.ne.s32.totalorder %s59, %s60
    %p72 = scmp.eq.s32.totalorder %s15, 1
    %p73 = por %p71, %p72
    %p75 = scmp.ne.s32.totalorder %s60, %s74
    %p76 = scmp.eq.s32.totalorder %s15, 0
    %p77 = por %p75, %p76
    %s79 = sadd.s32 %s78, 1
    %p82 = scmp.eq.s32.totalorder %s9, 1
    %p83 = scmp.ne.s32.totalorder %s78, %s80
    %p84 = scmp.eq.s32.totalorder %s9, 0
    %p85 = por %p83, %p84
    %p86 = scmp.ne.s32.totalorder %s78, %s80
    %p87 = scmp.eq.s32.totalorder %s14, 1
    %p88 = por %p86, %p87
    %p89 = scmp.ne.s32.totalorder %s80, %s81
    %p90 = scmp.eq.s32.totalorder %s14, 0
    %p91 = por %p89, %p90
    %p92 = scmp.ne.s32.totalorder %s80, %s81
    %p93 = scmp.eq.s32.totalorder %s15, 1
    %p94 = por %p92, %p93
    %p96 = scmp.ne.s32.totalorder %s81, %s95
    %p97 = scmp.eq.s32.totalorder %s15, 0
    %p98 = por %p96, %p97
    %s99 = ssub.s32 %s16, %s28
    %p100 = scmp.eq.s32.totalorder %s99, 0
    %s102 = sadd.s32 %s101, 1
    %s103 = scalar_select %p100, %s101, %s102
    %p106 = pneg %p100
    %p107 = scmp.eq.s32.totalorder %s9, 1
    %p108 = por %p106, %p107
    %p109 = scmp.ne.s32.totalorder %s101, %s104
    %p110 = scmp.eq.s32.totalorder %s9, 0
    %p111 = por %p109, %p110
    %p112 = scmp.ne.s32.totalorder %s101, %s104
    %p113 = scmp.eq.s32.totalorder %s14, 1
    %p114 = por %p112, %p113
    %p115 = scmp.ne.s32.totalorder %s104, %s105
    %p116 = scmp.eq.s32.totalorder %s14, 0
    %p117 = por %p115, %p116
    %p118 = scmp.ne.s32.totalorder %s104, %s105
    %p119 = scmp.eq.s32.totalorder %s15, 1
    %p120 = por %p118, %p119
    %p122 = scmp.ne.s32.totalorder %s105, %s121
    %p123 = scmp.eq.s32.totalorder %s15, 0
    %p124 = por %p122, %p123
    %p125 = scmp.le.s32.totalorder 1, %s9
    %p126 = scmp.lt.s32.totalorder %s9, 3
    %p127 = pnand %p125, %p126
    %p128 = pneg %p127
    // Predicated region
    $region9: #{channel_attention.1} parent=5 // pred_check
      _
    $region10: #{channel_attention.1} parent=5 // pred_check_branch
      %130 = sbr.rel (%p127) target = $region12
    $region11: #{channel_attention.1} parent=5 // pred_region
      %s131 = ssub.s32 %s9, 1
      // Predicated region
      $region13: #{channel_attention.1} parent=11 // pred_check
        %p132 = pneg %p70
      $region14: #{channel_attention.1} parent=11 // pred_check_branch
        %134 = sbr.rel (%p132) target = $region16
      $region15: #{channel_attention.1} parent=11 // pred_region
        _
      $region16: #{channel_attention.1} parent=11 // pred_fallthru
        _
      // Predicated region
      $region17: #{channel_attention.1} parent=11 // pred_check
        %p135 = pneg %p91
      $region18: #{channel_attention.1} parent=11 // pred_check_branch
        %137 = sbr.rel (%p135) target = $region20
      $region19: #{channel_attention.1} parent=11 // pred_region
        _
      $region20: #{channel_attention.1} parent=11 // pred_fallthru
        _
    $region12: #{channel_attention.1} parent=5 // pred_fallthru
      _
    %p138 = scmp.lt.s32.totalorder %s9, 2
    // Predicated region
    $region21: #{channel_attention.1} parent=5 // pred_check
      %p139 = pneg %p138
    $region22: #{channel_attention.1} parent=5 // pred_check_branch
      %141 = sbr.rel (%p139) target = $region24
    $region23: #{channel_attention.1} parent=5 // pred_region
      // Predicated region
      $region25: #{channel_attention.1} parent=23 // pred_check
        %p142 = pneg %p43
      $region26: #{channel_attention.1} parent=23 // pred_check_branch
        %144 = sbr.rel (%p142) target = $region28
      $region27: #{channel_attention.1} parent=23 // pred_region
        %s145 = smul.u32 2, %s17
        %p146 = scmp.lt.s32.totalorder %s16, 1
        %s147 = scalar_select %p146, %s16, 1
        %p148 = scmp.lt.s32.totalorder %s145, 1
        %s149 = scalar_select %p148, %s145, 1
        %s150 = smul.addr %s147, 16
        %s151 = sadd.s32 %s149, %s150
        %s152 = smul.addr %s151, 8
        %s153 = scalar_lea.vmem %s0, %s152
        %s154 = smul.u32 2, %s17
      $region28: #{channel_attention.1} parent=23 // pred_fallthru
        _
    $region24: #{channel_attention.1} parent=5 // pred_fallthru
      _
    %p155 = scmp.le.s32.totalorder 1, %s9
    %p156 = scmp.lt.s32.totalorder %s9, 3
    %p157 = pnand %p155, %p156
    %p158 = pneg %p157
    // Predicated region
    $region29: #{channel_attention.1} parent=5 // pred_check
      _
    $region30: #{channel_attention.1} parent=5 // pred_check_branch
      %160 = sbr.rel (%p157) target = $region32
    $region31: #{channel_attention.1} parent=5 // pred_region
      %s161 = ssub.s32 %s9, 1
      %s162 = smul.u32 2, %s19
      %p163 = scmp.lt.s32.totalorder %s18, 1
      %s164 = scalar_select %p163, %s18, 1
      %p165 = scmp.lt.s32.totalorder %s162, 1
      %s166 = scalar_select %p165, %s162, 1
      %s167 = smul.addr %s164, 16
      %s168 = sadd.s32 %s166, %s167
      %s169 = smul.addr %s168, 8
      %s170 = scalar_lea.vmem %s0, %s169
      %p171 = pneg %p49
      %p172 = pneg %p46
      %p173 = pneg %p70
      %p174 = pneg %p67
      %p175 = pneg %p91
      %p176 = pneg %p88
      %p177 = pneg %p117
      %p178 = pneg %p114
      %p179 = scmp.lt.s32.totalorder %s18, 1
      %s180 = scalar_select %p179, %s18, 1
      %s181 = smul.addr %s180, 8
      %s182 = smul.addr %s181, 8
      %s183 = scalar_lea.vmem %s3, %s182
      %s184 = smul.u32 2, %s19
      %p185 = scmp.lt.s32.totalorder %s18, 1
      %s186 = scalar_select %p185, %s18, 1
      %p187 = scmp.lt.s32.totalorder %s184, 1
      %s188 = scalar_select %p187, %s184, 1
      %s189 = smul.addr %s186, 16
      %s190 = sadd.s32 %s188, %s189
      %s191 = smul.addr %s190, 8
      %s192 = scalar_lea.vmem %s0, %s191
      %s193 = smul.u32 2, %s19
      %p194 = scmp.lt.s32.totalorder %s18, 1
      %s195 = scalar_select %p194, %s18, 1
      %s196 = smul.addr %s195, 8
      %s197 = smul.addr %s196, 8
      %s198 = scalar_lea.vmem %s3, %s197
      %v199 = vld [vmem:[%s192] sm:$0xff]
      %v200 = vld [vmem:[%s192 + $0x10] sm:$0xff]
      %v201 = vld [vmem:[%s192 + $0x20] sm:$0xff]
      %v202 = vld [vmem:[%s192 + $0x30] sm:$0xff]
      %v203 = vld [vmem:[%s192 + $0x40] sm:$0xff]
      %v204 = vld [vmem:[%s192 + $0x50] sm:$0xff]
      %v205 = vld [vmem:[%s192 + $0x60] sm:$0xff]
      %v206 = vld [vmem:[%s192 + $0x70] sm:$0xff]
      %v207 = vld [vmem:[%s192 + $0x8] sm:$0xff]
      %v208 = vld [vmem:[%s192 + $0x18] sm:$0xff]
      %v209 = vld [vmem:[%s192 + $0x28] sm:$0xff]
      %v210 = vld [vmem:[%s192 + $0x38] sm:$0xff]
      %v211 = vld [vmem:[%s192 + $0x48] sm:$0xff]
      %v212 = vld [vmem:[%s192 + $0x58] sm:$0xff]
      %v213 = vld [vmem:[%s192 + $0x68] sm:$0xff]
      %v214 = vld [vmem:[%s192 + $0x78] sm:$0xff]
      %v215 = vadd.f32 %v199, %v207
      %v216 = vadd.f32 %v200, %v208
      %v217 = vadd.f32 %v201, %v209
      %v218 = vadd.f32 %v202, %v210
      %v219 = vadd.f32 %v203, %v211
      %v220 = vadd.f32 %v204, %v212
      %v221 = vadd.f32 %v205, %v213
      %v222 = vadd.f32 %v206, %v214
      %v223 = vmax.f32 %v199, %v207
      %v224 = vmax.f32 %v200, %v208
      %v225 = vmax.f32 %v201, %v209
      %v226 = vmax.f32 %v202, %v210
      %v227 = vmax.f32 %v203, %v211
      %v228 = vmax.f32 %v204, %v212
      %v229 = vmax.f32 %v205, %v213
      %v230 = vmax.f32 %v206, %v214
      %p231 = scmp.eq.s32.totalorder %s19, 0
      // Predicated region
      $region33: #{channel_attention.1} parent=31 // pred_check
        %p232 = pneg %p231
      $region34: #{channel_attention.1} parent=31 // pred_check_branch
        %234 = sbr.rel (%p232) target = $region36
      $region35: #{channel_attention.1} parent=31 // pred_region
        %235 = vst [vmem:[#allocation2] sm:$0xff] %v215
        %236 = vst [vmem:[#allocation2 + $0x8] sm:$0xff] %v216
        %237 = vst [vmem:[#allocation2 + $0x10] sm:$0xff] %v217
        %238 = vst [vmem:[#allocation2 + $0x18] sm:$0xff] %v218
        %239 = vst [vmem:[#allocation2 + $0x20] sm:$0xff] %v219
        %240 = vst [vmem:[#allocation2 + $0x28] sm:$0xff] %v220
        %241 = vst [vmem:[#allocation2 + $0x30] sm:$0xff] %v221
        %242 = vst [vmem:[#allocation2 + $0x38] sm:$0xff] %v222
        %243 = vst [vmem:[#allocation3] sm:$0xff] %v223
        %244 = vst [vmem:[#allocation3 + $0x8] sm:$0xff] %v224
        %245 = vst [vmem:[#allocation3 + $0x10] sm:$0xff] %v225
        %246 = vst [vmem:[#allocation3 + $0x18] sm:$0xff] %v226
        %247 = vst [vmem:[#allocation3 + $0x20] sm:$0xff] %v227
        %248 = vst [vmem:[#allocation3 + $0x28] sm:$0xff] %v228
        %249 = vst [vmem:[#allocation3 + $0x30] sm:$0xff] %v229
        %250 = vst [vmem:[#allocation3 + $0x38] sm:$0xff] %v230
      $region36: #{channel_attention.1} parent=31 // pred_fallthru
        _
      %p251 = scmp.gt.s32.totalorder %s19, 0
      // Predicated region
      $region37: #{channel_attention.1} parent=31 // pred_check
        %p252 = pneg %p251
      $region38: #{channel_attention.1} parent=31 // pred_check_branch
        %254 = sbr.rel (%p252) target = $region40
      $region39: #{channel_attention.1} parent=31 // pred_region
        %v255 = vld [vmem:[#allocation2] sm:$0xff]
        %v256 = vld [vmem:[#allocation2 + $0x8] sm:$0xff]
        %v257 = vld [vmem:[#allocation2 + $0x10] sm:$0xff]
        %v258 = vld [vmem:[#allocation2 + $0x18] sm:$0xff]
        %v259 = vld [vmem:[#allocation2 + $0x20] sm:$0xff]
        %v260 = vld [vmem:[#allocation2 + $0x28] sm:$0xff]
        %v261 = vld [vmem:[#allocation2 + $0x30] sm:$0xff]
        %v262 = vld [vmem:[#allocation2 + $0x38] sm:$0xff]
        %v263 = vadd.f32 %v255, %v215
        %v264 = vadd.f32 %v256, %v216
        %v265 = vadd.f32 %v257, %v217
        %v266 = vadd.f32 %v258, %v218
        %v267 = vadd.f32 %v259, %v219
        %v268 = vadd.f32 %v260, %v220
        %v269 = vadd.f32 %v261, %v221
        %v270 = vadd.f32 %v262, %v222
        %271 = vst [vmem:[#allocation2] sm:$0xff] %v263
        %272 = vst [vmem:[#allocation2 + $0x8] sm:$0xff] %v264
        %273 = vst [vmem:[#allocation2 + $0x10] sm:$0xff] %v265
        %274 = vst [vmem:[#allocation2 + $0x18] sm:$0xff] %v266
        %275 = vst [vmem:[#allocation2 + $0x20] sm:$0xff] %v267
        %276 = vst [vmem:[#allocation2 + $0x28] sm:$0xff] %v268
        %277 = vst [vmem:[#allocation2 + $0x30] sm:$0xff] %v269
        %278 = vst [vmem:[#allocation2 + $0x38] sm:$0xff] %v270
        %v279 = vld [vmem:[#allocation3] sm:$0xff]
        %v280 = vld [vmem:[#allocation3 + $0x8] sm:$0xff]
        %v281 = vld [vmem:[#allocation3 + $0x10] sm:$0xff]
        %v282 = vld [vmem:[#allocation3 + $0x18] sm:$0xff]
        %v283 = vld [vmem:[#allocation3 + $0x20] sm:$0xff]
        %v284 = vld [vmem:[#allocation3 + $0x28] sm:$0xff]
        %v285 = vld [vmem:[#allocation3 + $0x30] sm:$0xff]
        %v286 = vld [vmem:[#allocation3 + $0x38] sm:$0xff]
        %v287 = vmax.f32 %v279, %v223
        %v288 = vmax.f32 %v280, %v224
        %v289 = vmax.f32 %v281, %v225
        %v290 = vmax.f32 %v282, %v226
        %v291 = vmax.f32 %v283, %v227
        %v292 = vmax.f32 %v284, %v228
        %v293 = vmax.f32 %v285, %v229
        %v294 = vmax.f32 %v286, %v230
        %295 = vst [vmem:[#allocation3] sm:$0xff] %v287
        %296 = vst [vmem:[#allocation3 + $0x8] sm:$0xff] %v288
        %297 = vst [vmem:[#allocation3 + $0x10] sm:$0xff] %v289
        %298 = vst [vmem:[#allocation3 + $0x18] sm:$0xff] %v290
        %299 = vst [vmem:[#allocation3 + $0x20] sm:$0xff] %v291
        %300 = vst [vmem:[#allocation3 + $0x28] sm:$0xff] %v292
        %301 = vst [vmem:[#allocation3 + $0x30] sm:$0xff] %v293
        %302 = vst [vmem:[#allocation3 + $0x38] sm:$0xff] %v294
      $region40: #{channel_attention.1} parent=31 // pred_fallthru
        _
      // Predicated region
      $region41: #{channel_attention.1} parent=31 // pred_check
        %p303 = pneg %p231
      $region42: #{channel_attention.1} parent=31 // pred_check_branch
        %305 = sbr.rel (%p303) target = $region44
      $region43: #{channel_attention.1} parent=31 // pred_region
        %v306 = vld [vmem:[#allocation2] sm:$0xff]
        %v307 = vld [vmem:[#allocation2 + $0x8] sm:$0xff]
        %v308 = vld [vmem:[#allocation2 + $0x10] sm:$0xff]
        %v309 = vld [vmem:[#allocation2 + $0x18] sm:$0xff]
        %v310 = vld [vmem:[#allocation2 + $0x20] sm:$0xff]
        %v311 = vld [vmem:[#allocation2 + $0x28] sm:$0xff]
        %v312 = vld [vmem:[#allocation2 + $0x30] sm:$0xff]
        %v313 = vld [vmem:[#allocation2 + $0x38] sm:$0xff]
        %314 = vadd.xlane.f32.xlu0 %v306
        %v315 = vpop.xlane.xlu0 %314
        %316 = vadd.xlane.f32.xlu0 %v307
        %v317 = vpop.xlane.xlu0 %316
        %318 = vadd.xlane.f32.xlu0 %v308
        %v319 = vpop.xlane.xlu0 %318
        %320 = vadd.xlane.f32.xlu0 %v309
        %v321 = vpop.xlane.xlu0 %320
        %322 = vadd.xlane.f32.xlu0 %v310
        %v323 = vpop.xlane.xlu0 %322
        %324 = vadd.xlane.f32.xlu0 %v311
        %v325 = vpop.xlane.xlu0 %324
        %326 = vadd.xlane.f32.xlu0 %v312
        %v327 = vpop.xlane.xlu0 %326
        %328 = vadd.xlane.f32.xlu0 %v313
        %v329 = vpop.xlane.xlu0 %328
        %v330 = vmul.f32 %v315, 0.00390625
        %v331 = vmul.f32 %v317, 0.00390625
        %v332 = vmul.f32 %v319, 0.00390625
        %v333 = vmul.f32 %v321, 0.00390625
        %v334 = vmul.f32 %v323, 0.00390625
        %v335 = vmul.f32 %v325, 0.00390625
        %v336 = vmul.f32 %v327, 0.00390625
        %v337 = vmul.f32 %v329, 0.00390625
        %v338 = vld [vmem:[#allocation3] sm:$0xff]
        %v339 = vld [vmem:[#allocation3 + $0x8] sm:$0xff]
        %v340 = vld [vmem:[#allocation3 + $0x10] sm:$0xff]
        %v341 = vld [vmem:[#allocation3 + $0x18] sm:$0xff]
        %v342 = vld [vmem:[#allocation3 + $0x20] sm:$0xff]
        %v343 = vld [vmem:[#allocation3 + $0x28] sm:$0xff]
        %v344 = vld [vmem:[#allocation3 + $0x30] sm:$0xff]
        %v345 = vld [vmem:[#allocation3 + $0x38] sm:$0xff]
        %346 = vmax.xlane.f32.xlu0 %v338
        %v347 = vpop.xlane.xlu0 %346
        %348 = vmax.xlane.f32.xlu0 %v339
        %v349 = vpop.xlane.xlu0 %348
        %350 = vmax.xlane.f32.xlu0 %v340
        %v351 = vpop.xlane.xlu0 %350
        %352 = vmax.xlane.f32.xlu0 %v341
        %v353 = vpop.xlane.xlu0 %352
        %354 = vmax.xlane.f32.xlu0 %v342
        %v355 = vpop.xlane.xlu0 %354
        %356 = vmax.xlane.f32.xlu0 %v343
        %v357 = vpop.xlane.xlu0 %356
        %358 = vmax.xlane.f32.xlu0 %v344
        %v359 = vpop.xlane.xlu0 %358
        %360 = vmax.xlane.f32.xlu0 %v345
        %v361 = vpop.xlane.xlu0 %360
        %vm362 = vcmask 7168
        %v363 = vsel %vm362, %v330, %v347
        %v364 = vsel %vm362, %v331, %v349
        %v365 = vsel %vm362, %v332, %v351
        %v366 = vsel %vm362, %v333, %v353
        %v367 = vsel %vm362, %v334, %v355
        %v368 = vsel %vm362, %v335, %v357
        %v369 = vsel %vm362, %v336, %v359
        %v370 = vsel %vm362, %v337, %v361
        %v371 = vld [vmem:[%s1] sm:$0xf]
        %vm372 = vcmask 523264
        %v374 = vsel %vm372, %v371, 0
        %376 = vmatprep.subr.mxu0 0.0
        %377 = vmatpush1.msra.mxu0 %v363
        %378 = vmatprep.subr.mxu0 0.0
        %379 = vmatpush1.msra.mxu0 %v364
        %380 = vmatprep.subr.mxu0 0.0
        %381 = vmatpush1.msra.mxu0 %v365
        %382 = vmatprep.subr.mxu0 0.0
        %383 = vmatpush1.msra.mxu0 %v366
        %384 = vmatprep.subr.mxu0 0.0
        %385 = vmatpush1.msra.mxu0 %v367
        %386 = vmatprep.subr.mxu0 0.0
        %387 = vmatpush1.msra.mxu0 %v368
        %388 = vmatprep.subr.mxu0 0.0
        %389 = vmatpush1.msra.mxu0 %v369
        %390 = vmatprep.subr.mxu0 0.0
        %391 = vmatpush1.msra.mxu0 %v370
        %392 = vmatprep.subr.mxu0 0.0
        %393 = vmatpush1.msra.mxu0 0.0
        %394 = vmatprep.subr.mxu0 0.0
        %395 = vmatpush1.msra.mxu0 0.0
        %396 = vmatprep.subr.mxu0 0.0
        %397 = vmatpush1.msra.mxu0 0.0
        %398 = vmatprep.subr.mxu0 0.0
        %399 = vmatpush1.msra.mxu0 0.0
        %400 = vmatprep.subr.mxu0 0.0
        %401 = vmatpush1.msra.mxu0 0.0
        %402 = vmatprep.subr.mxu0 0.0
        %403 = vmatpush1.msra.mxu0 0.0
        %404 = vmatprep.subr.mxu0 0.0
        %405 = vmatpush1.msra.mxu0 0.0
        %406 = vmatprep.subr.mxu0 0.0
        %407 = vmatpush1.msra.mxu0 0.0
        %408 = vmatprep.subr.mxu0 0.0
        %409 = vmatpush1.msra.mxu0 0.0
        %410 = vmatprep.subr.mxu0 0.0
        %411 = vmatpush1.msra.mxu0 0.0
        %412 = vmatprep.subr.mxu0 0.0
        %413 = vmatpush1.msra.mxu0 0.0
        %414 = vmatprep.subr.mxu0 0.0
        %415 = vmatpush1.msra.mxu0 0.0
        %416 = vmatprep.subr.mxu0 0.0
        %417 = vmatpush1.msra.mxu0 0.0
        %418 = vmatprep.subr.mxu0 0.0
        %419 = vmatpush1.msra.mxu0 0.0
        %420 = vmatprep.subr.mxu0 0.0
        %421 = vmatpush1.msra.mxu0 0.0
        %422 = vmatprep.subr.mxu0 0.0
        %423 = vmatpush1.msra.mxu0 0.0
        %424 = vmatprep.subr.mxu0 0.0
        %425 = vmatpush1.msra.mxu0 0.0
        %426 = vmatprep.subr.mxu0 0.0
        %427 = vmatpush1.msra.mxu0 0.0
        %428 = vmatprep.subr.mxu0 0.0
        %429 = vmatpush1.msra.mxu0 0.0
        %430 = vmatprep.subr.mxu0 0.0
        %431 = vmatpush1.msra.mxu0 0.0
        %432 = vmatprep.subr.mxu0 0.0
        %433 = vmatpush1.msra.mxu0 0.0
        %434 = vmatprep.subr.mxu0 0.0
        %435 = vmatpush1.msra.mxu0 0.0
        %436 = vmatprep.subr.mxu0 0.0
        %437 = vmatpush1.msra.mxu0 0.0
        %438 = vmatprep.subr.mxu0 0.0
        %439 = vmatpush1.msra.mxu0 0.0
        %440 = vmatprep.mubr.f32.mxu0 0.0
        %441 = vmatmul.mubr.f32.gmra.mrb[0].mxu0 %v374
        %v442 = vpop.f32.mrb[0].mxu0
        %v443 = vadd.f32 0.0, %v442
        %v444 = vpop.f32.mrb[0].mxu0
        %445 = vdwg.mxu0
        %v446 = vmax.f32 %v443, 0.0
        %448 = vrot.lane.b32.xlu0 %v446, 127
        %v449 = vpop.permute.xlu0 %448
        %v451 = vadd.f32 %v446, %v449
        %v452 = vld [vmem:[%s2] sm:$0xff]
        %v453 = vld [vmem:[%s2 + $0x8] sm:$0xff]
        %v454 = vld [vmem:[%s2 + $0x10] sm:$0xff]
        %v455 = vld [vmem:[%s2 + $0x18] sm:$0xff]
        %v456 = vld [vmem:[%s2 + $0x20] sm:$0xff]
        %v457 = vld [vmem:[%s2 + $0x28] sm:$0xff]
        %v458 = vld [vmem:[%s2 + $0x30] sm:$0xff]
        %v459 = vld [vmem:[%s2 + $0x38] sm:$0xff]
        %vm460 = vcmask 31744
        %v462 = vsel %vm460, %v452, 0
        %v465 = vsel %vm460, %v453, 0
        %v468 = vsel %vm460, %v454, 0
        %v471 = vsel %vm460, %v455, 0
        %v474 = vsel %vm460, %v456, 0
        %v477 = vsel %vm460, %v457, 0
        %v480 = vsel %vm460, %v458, 0
        %v483 = vsel %vm460, %v459, 0
        %vm485 = vcmask 1043456
        %v487 = vsel %vm485, %v451, 0
        %489 = vmatprep.subr.mxu0 0.0
        %490 = vmatpush1.msra.mxu0 %v487
        %491 = vmatprep.subr.mxu0 0.0
        %492 = vmatpush1.msra.mxu0 0.0
        %493 = vmatprep.subr.mxu0 0.0
        %494 = vmatpush1.msra.mxu0 0.0
        %495 = vmatprep.subr.mxu0 0.0
        %496 = vmatpush1.msra.mxu0 0.0
        %497 = vmatprep.subr.mxu0 0.0
        %498 = vmatpush1.msra.mxu0 0.0
        %499 = vmatprep.subr.mxu0 0.0
        %500 = vmatpush1.msra.mxu0 0.0
        %501 = vmatprep.subr.mxu0 0.0
        %502 = vmatpush1.msra.mxu0 0.0
        %503 = vmatprep.subr.mxu0 0.0
        %504 = vmatpush1.msra.mxu0 0.0
        %505 = vmatprep.subr.mxu0 0.0
        %506 = vmatpush1.msra.mxu0 0.0
        %507 = vmatprep.subr.mxu0 0.0
        %508 = vmatpush1.msra.mxu0 0.0
        %509 = vmatprep.subr.mxu0 0.0
        %510 = vmatpush1.msra.mxu0 0.0
        %511 = vmatprep.subr.mxu0 0.0
        %512 = vmatpush1.msra.mxu0 0.0
        %513 = vmatprep.subr.mxu0 0.0
        %514 = vmatpush1.msra.mxu0 0.0
        %515 = vmatprep.subr.mxu0 0.0
        %516 = vmatpush1.msra.mxu0 0.0
        %517 = vmatprep.subr.mxu0 0.0
        %518 = vmatpush1.msra.mxu0 0.0
        %519 = vmatprep.subr.mxu0 0.0
        %520 = vmatpush1.msra.mxu0 0.0
        %521 = vmatprep.subr.mxu0 0.0
        %522 = vmatpush1.msra.mxu0 0.0
        %523 = vmatprep.subr.mxu0 0.0
        %524 = vmatpush1.msra.mxu0 0.0
        %525 = vmatprep.subr.mxu0 0.0
        %526 = vmatpush1.msra.mxu0 0.0
        %527 = vmatprep.subr.mxu0 0.0
        %528 = vmatpush1.msra.mxu0 0.0
        %529 = vmatprep.subr.mxu0 0.0
        %530 = vmatpush1.msra.mxu0 0.0
        %531 = vmatprep.subr.mxu0 0.0
        %532 = vmatpush1.msra.mxu0 0.0
        %533 = vmatprep.subr.mxu0 0.0
        %534 = vmatpush1.msra.mxu0 0.0
        %535 = vmatprep.subr.mxu0 0.0
        %536 = vmatpush1.msra.mxu0 0.0
        %537 = vmatprep.subr.mxu0 0.0
        %538 = vmatpush1.msra.mxu0 0.0
        %539 = vmatprep.subr.mxu0 0.0
        %540 = vmatpush1.msra.mxu0 0.0
        %541 = vmatprep.subr.mxu0 0.0
        %542 = vmatpush1.msra.mxu0 0.0
        %543 = vmatprep.subr.mxu0 0.0
        %544 = vmatpush1.msra.mxu0 0.0
        %545 = vmatprep.subr.mxu0 0.0
        %546 = vmatpush1.msra.mxu0 0.0
        %547 = vmatprep.subr.mxu0 0.0
        %548 = vmatpush1.msra.mxu0 0.0
        %549 = vmatprep.subr.mxu0 0.0
        %550 = vmatpush1.msra.mxu0 0.0
        %551 = vmatprep.subr.mxu0 0.0
        %552 = vmatpush1.msra.mxu0 0.0
        %553 = vmatprep.mubr.f32.mxu0 0.0
        %554 = vmatmul.mubr.f32.gmra.mrb[0].mxu0 %v462
        %v555 = vpop.f32.mrb[0].mxu0
        %v556 = vadd.f32 0.0, %v555
        %v557 = vpop.f32.mrb[0].mxu0
        %558 = vmatprep.mubr.f32.mxu0 0.0
        %559 = vmatmul.mubr.f32.gmra.mrb[0].mxu0 %v465
        %v560 = vpop.f32.mrb[0].mxu0
        %v561 = vadd.f32 0.0, %v560
        %v562 = vpop.f32.mrb[0].mxu0
        %563 = vmatprep.mubr.f32.mxu0 0.0
        %564 = vmatmul.mubr.f32.gmra.mrb[0].mxu0 %v468
        %v565 = vpop.f32.mrb[0].mxu0
        %v566 = vadd.f32 0.0, %v565
        %v567 = vpop.f32.mrb[0].mxu0
        %568 = vmatprep.mubr.f32.mxu0 0.0
        %569 = vmatmul.mubr.f32.gmra.mrb[0].mxu0 %v471
        %v570 = vpop.f32.mrb[0].mxu0
        %v571 = vadd.f32 0.0, %v570
        %v572 = vpop.f32.mrb[0].mxu0
        %573 = vmatprep.mubr.f32.mxu0 0.0
        %574 = vmatmul.mubr.f32.gmra.mrb[0].mxu0 %v474
        %v575 = vpop.f32.mrb[0].mxu0
        %v576 = vadd.f32 0.0, %v575
        %v577 = vpop.f32.mrb[0].mxu0
        %578 = vmatprep.mubr.f32.mxu0 0.0
        %579 = vmatmul.mubr.f32.gmra.mrb[0].mxu0 %v477
        %v580 = vpop.f32.mrb[0].mxu0
        %v581 = vadd.f32 0.0, %v580
        %v582 = vpop.f32.mrb[0].mxu0
        %583 = vmatprep.mubr.f32.mxu0 0.0
        %584 = vmatmul.mubr.f32.gmra.mrb[0].mxu0 %v480
        %v585 = vpop.f32.mrb[0].mxu0
        %v586 = vadd.f32 0.0, %v585
        %v587 = vpop.f32.mrb[0].mxu0
        %588 = vmatprep.mubr.f32.mxu0 0.0
        %589 = vmatmul.mubr.f32.gmra.mrb[0].mxu0 %v483
        %v590 = vpop.f32.mrb[0].mxu0
        %v591 = vadd.f32 0.0, %v590
        %v592 = vpop.f32.mrb[0].mxu0
        %593 = vdwg.mxu0
        %v594 = vxor.u32 %v556, 2147483648
        %v595 = vxor.u32 %v561, 2147483648
        %v596 = vxor.u32 %v566, 2147483648
        %v597 = vxor.u32 %v571, 2147483648
        %v598 = vxor.u32 %v576, 2147483648
        %v599 = vxor.u32 %v581, 2147483648
        %v600 = vxor.u32 %v586, 2147483648
        %v601 = vxor.u32 %v591, 2147483648
        %v602 = vmul.f32 %v594, 1.442695
        %v603 = vpow.pop %v602
        %v604 = vmul.f32 %v595, 1.442695
        %v605 = vpow.pop %v604
        %v606 = vmul.f32 %v596, 1.442695
        %v607 = vpow.pop %v606
        %v608 = vmul.f32 %v597, 1.442695
        %v609 = vpow.pop %v608
        %v610 = vmul.f32 %v598, 1.442695
        %v611 = vpow.pop %v610
        %v612 = vmul.f32 %v599, 1.442695
        %v613 = vpow.pop %v612
        %v614 = vmul.f32 %v600, 1.442695
        %v615 = vpow.pop %v614
        %v616 = vmul.f32 %v601, 1.442695
        %v617 = vpow.pop %v616
        %v618 = vadd.f32 %v603, 1.0
        %v619 = vadd.f32 %v605, 1.0
        %v620 = vadd.f32 %v607, 1.0
        %v621 = vadd.f32 %v609, 1.0
        %v622 = vadd.f32 %v611, 1.0
        %v623 = vadd.f32 %v613, 1.0
        %v624 = vadd.f32 %v615, 1.0
        %v625 = vadd.f32 %v617, 1.0
        %v626 = vrcp.pop %v618
        %v627 = vmul.f32 1.0, %v626
        %v628 = vrcp.pop %v619
        %v629 = vmul.f32 1.0, %v628
        %v630 = vrcp.pop %v620
        %v631 = vmul.f32 1.0, %v630
        %v632 = vrcp.pop %v621
        %v633 = vmul.f32 1.0, %v632
        %v634 = vrcp.pop %v622
        %v635 = vmul.f32 1.0, %v634
        %v636 = vrcp.pop %v623
        %v637 = vmul.f32 1.0, %v636
        %v638 = vrcp.pop %v624
        %v639 = vmul.f32 1.0, %v638
        %v640 = vrcp.pop %v625
        %v641 = vmul.f32 1.0, %v640
        %642 = vst.msk [vmem:[%s198] sm:$0xff] %vm362, %v627
        %643 = vst.msk [vmem:[%s198 + $0x8] sm:$0xff] %vm362, %v629
        %644 = vst.msk [vmem:[%s198 + $0x10] sm:$0xff] %vm362, %v631
        %645 = vst.msk [vmem:[%s198 + $0x18] sm:$0xff] %vm362, %v633
        %646 = vst.msk [vmem:[%s198 + $0x20] sm:$0xff] %vm362, %v635
        %647 = vst.msk [vmem:[%s198 + $0x28] sm:$0xff] %vm362, %v637
        %648 = vst.msk [vmem:[%s198 + $0x30] sm:$0xff] %vm362, %v639
        %649 = vst.msk [vmem:[%s198 + $0x38] sm:$0xff] %vm362, %v641
      $region44: #{channel_attention.1} parent=31 // pred_fallthru
        _
      %p650 = scmp.lt.s32.totalorder %s18, 1
      %s651 = scalar_select %p650, %s18, 1
      %s652 = smul.addr %s651, 8
      %s653 = smul.addr %s652, 8
      %s654 = scalar_lea.vmem %s3, %s653
      // Predicated region
      $region45: #{channel_attention.1} parent=31 // pred_check
        %p655 = pneg %p114
      $region46: #{channel_attention.1} parent=31 // pred_check_branch
        %657 = sbr.rel (%p655) target = $region48
      $region47: #{channel_attention.1} parent=31 // pred_region
        _
      $region48: #{channel_attention.1} parent=31 // pred_fallthru
        _
    $region32: #{channel_attention.1} parent=5 // pred_fallthru
      _
    %p658 = scmp.le.s32.totalorder 2, %s9
    // Predicated region
    $region49: #{channel_attention.1} parent=5 // pred_check
      %p659 = pneg %p658
    $region50: #{channel_attention.1} parent=5 // pred_check_branch
      %661 = sbr.rel (%p659) target = $region52
    $region51: #{channel_attention.1} parent=5 // pred_region
      %s662 = ssub.s32 %s9, 2
      // Predicated region
      $region53: #{channel_attention.1} parent=51 // pred_check
        %p663 = pneg %p120
      $region54: #{channel_attention.1} parent=51 // pred_check_branch
        %665 = sbr.rel (%p663) target = $region56
      $region55: #{channel_attention.1} parent=51 // pred_region
        %p666 = scmp.lt.s32.totalorder %s20, 1
        %s667 = scalar_select %p666, %s20, 1
        %s668 = smul.addr %s667, 8
        %s669 = smul.addr %s668, 8
        %s670 = scalar_lea.vmem %s3, %s669
      $region56: #{channel_attention.1} parent=51 // pred_fallthru
        _
    $region52: #{channel_attention.1} parent=5 // pred_fallthru
      _
  $region6: #{channel_attention.1} parent=0 // loop_footer
    %s13 = sadd.s32 1, %s9
  $region7: #{channel_attention.1} parent=0 // loop_footer_branch
    %8 = sbr.rel target = $region3
  $region8: #{channel_attention.1} parent=0 // loop_exit
    _

</llo_original>
